<compile_context>
chip_gen: v7x
topology: tpu7x:2x2x1
jax: 0.10.0
libtpu: 0.0.40
codegen_flags: <defaults>
</compile_context>

<pallas_src>
import jax
import jax.numpy as jnp
from jax.experimental import pallas as pl
from jax.experimental.pallas import tpu as pltpu

EPS = 1e-5
LANES = 128
SUB = 8


def _pad8(n):
    return ((n + SUB - 1) // SUB) * SUB


# ---------------- parameter slab layout ----------------

def build_layout(dim_in, num_nodes):
    """Row offsets of every parameter inside the single packed slab.

    Layer 0 weight occupies pad8(dim_in) rows (x still has dim_in lanes);
    every later weight occupies 128 rows because the running activation h is
    kept lane-dense at 128 lanes (extra rows are zero so they contribute 0).
    Each bias / PH row-vector gets its own 8-row-aligned block (data in row 0).
    """
    dims = [dim_in] + list(num_nodes)
    layout = {"dense": [], "ph": {}}
    row = 0
    for i, (d_in, d_out) in enumerate(zip(dims[:-1], dims[1:])):
        w_rows = _pad8(d_in) if i == 0 else LANES
        layout["dense"].append(
            {"w_off": row, "w_rows": w_rows, "d_in": d_in, "d_out": d_out,
             "b_off": row + w_rows})
        row += w_rows + SUB
    layout["ph"]["w1_off"] = row
    row += SUB
    layout["ph"]["b2_off"] = row
    row += SUB
    layout["total_rows"] = row
    return layout


def init_params(key, dim_in, num_nodes, dim_out):
    """Deterministic init matching the PyTorch module, packed into one slab."""
    dims = [dim_in] + list(num_nodes)
    assert dim_in <= LANES and max(dims) <= LANES and dim_out <= LANES, \
        "single-vreg-wide design assumes all widths <= 128"
    layout = build_layout(dim_in, num_nodes)
    slab = jnp.zeros((layout["total_rows"], LANES), jnp.float32)

    for (d_in, d_out), ent in zip(zip(dims[:-1], dims[1:]), layout["dense"]):
        key, kw, kb = jax.random.split(key, 3)
        # kaiming_normal_(nonlinearity='relu'), fan_in = d_in; stored TRANSPOSED
        w = (jax.random.normal(kw, (d_out, d_in), jnp.float32)
             * jnp.sqrt(2.0 / d_in)).T                      # (d_in, d_out)
        # nn.Linear default bias init: U(-1/sqrt(fan_in), 1/sqrt(fan_in))
        bound = 1.0 / jnp.sqrt(d_in)
        b = jax.random.uniform(kb, (d_out,), jnp.float32, -bound, bound)
        slab = slab.at[ent["w_off"]:ent["w_off"] + d_in, :d_out].set(w)
        slab = slab.at[ent["b_off"], :d_out].set(b)

    d_last = dims[-1]
    key, kw1, kb2 = jax.random.split(key, 3)
    # PHBlock.linear1: nn.Linear default init, no bias
    bound1 = 1.0 / jnp.sqrt(d_last)
    w1 = jax.random.uniform(kw1, (d_last,), jnp.float32, -bound1, bound1)
    # PHBlock.linear2: weight frozen to ones (implicit broadcast), bias ~ N(0, .5)
    b2 = jax.random.normal(kb2, (dim_out,), jnp.float32) * 0.5
    slab = slab.at[layout["ph"]["w1_off"], :d_last].set(w1)
    slab = slab.at[layout["ph"]["b2_off"], :dim_out].set(b2)
    return slab, layout


# ---------------- fused Pallas kernel ----------------

def make_fused_kernel(layout, dim_in, batch):
    dense = layout["dense"]
    w1_off = layout["ph"]["w1_off"]
    b2_off = layout["ph"]["b2_off"]
    inv_b = 1.0 / float(batch)

    def kernel(x_ref, slab_ref, o_ref):
        h = x_ref[...]                                    # (B, dim_in) f32
        ones_row = jnp.ones((1, batch), jnp.float32)      # hoisted out of loop

        for i, ent in enumerate(dense):
            w_blk = slab_ref[ent["w_off"]:ent["w_off"] + ent["w_rows"], :]
            w = w_blk[:dim_in, :] if i == 0 else w_blk    # (Din|128, 128)
            b = slab_ref[ent["b_off"]:ent["b_off"] + 1, :]            # (1, 128)
            # Linear + bias + ReLU; zero-padded lanes stay exactly 0.
            h = jnp.dot(h, w, preferred_element_type=jnp.float32) + b
            h = jnp.maximum(h, 0.0)                                   # (B, 128)
            # BatchNorm (train mode): batch stats via the idle MXU, not XLU.
            mean = jnp.dot(ones_row, h, preferred_element_type=jnp.float32) * inv_b
            mean_sq = jnp.dot(ones_row, h * h,
                              preferred_element_type=jnp.float32) * inv_b
            var = jnp.maximum(mean_sq - mean * mean, 0.0)
            h = (h - mean) * jax.lax.rsqrt(var + EPS)     # padded lanes remain 0

        # ---- PHBlock ----
        w1 = slab_ref[w1_off:w1_off + 1, :]               # (1, 128), zero-padded
        b2 = slab_ref[b2_off:b2_off + 1, :]               # (1, 128), zero-padded
        # x @ w1.T as a lane-reduce (XLU) -- avoids a 1-lane MXU matmul.
        y = jnp.sum(h * w1, axis=-1, keepdims=True)       # (B, 1)
        mean = jnp.mean(y, axis=0, keepdims=True)
        mean_sq = jnp.mean(y * y, axis=0, keepdims=True)
        var = jnp.maximum(mean_sq - mean * mean, 0.0)
        y = (y - mean) * jax.lax.rsqrt(var + EPS)         # BatchNorm1d(1)
        # linear2.weight frozen to ones -> broadcast; write full 128-lane slab
        # (unmasked vst); wrapper slices the real dim_out lanes.
        o_ref[...] = jnp.broadcast_to(y, o_ref.shape) + b2

    return kernel


# ---------------- wrapper ----------------

def mlpph_forward(slab, layout, x, dim_out):
    B, dim_in = x.shape
    kernel = make_fused_kernel(layout, dim_in, B)
    vmem = pl.BlockSpec(memory_space=pltpu.MemorySpace.VMEM)

    # Advisory cost hint for XLA scheduling around the custom call.
    dims = [ent["d_in"] for ent in layout["dense"]] + [layout["dense"][-1]["d_out"]]
    mm_flops = 2 * B * sum(a * b for a, b in zip(dims[:-1], dims[1:]))
    stat_flops = 4 * B * LANES * len(layout["dense"])
    ph_flops = 2 * B * dims[-1]
    bytes_accessed = (x.size + slab.size + B * LANES) * 4
    cost = pl.CostEstimate(flops=mm_flops + stat_flops + ph_flops,
                           transcendentals=LANES * len(layout["dense"]) + 1,
                           bytes_accessed=bytes_accessed)

    out_padded = pl.pallas_call(
        kernel,
        out_shape=jax.ShapeDtypeStruct((B, LANES), jnp.float32),
        in_specs=[vmem, vmem],
        out_specs=vmem,
        compiler_params=pltpu.CompilerParams(vmem_limit_bytes=32 * 1024 * 1024),
        cost_estimate=cost,
    )(x, slab)
    return out_padded[:, :dim_out]


# ---------------- pure-JAX reference (same math) ----------------

def ref_forward(slab, layout, x, dims, dim_out):
    h = x
    d_prev = dims[0]
    for ent, d_out in zip(layout["dense"], dims[1:]):
        w = slab[ent["w_off"]:ent["w_off"] + d_prev, :d_out]
        b = slab[ent["b_off"], :d_out]
        h = jnp.maximum(h @ w + b, 0.0)
        m = h.mean(0, keepdims=True)
        v = ((h - m) ** 2).mean(0, keepdims=True)
        h = (h - m) * jax.lax.rsqrt(v + EPS)
        d_prev = d_out
    w1 = slab[layout["ph"]["w1_off"], :d_prev]
    b2 = slab[layout["ph"]["b2_off"], :dim_out]
    y = h @ w1[:, None]
    m = y.mean(0, keepdims=True)
    v = ((y - m) ** 2).mean(0, keepdims=True)
    y = (y - m) * jax.lax.rsqrt(v + EPS)
    return jnp.broadcast_to(y, (x.shape[0], dim_out)) + b2


# ---------------- main ----------------

if __name__ == "__main__":
    B, dim_in, num_nodes, dim_out = 8, 16, [32, 32], 4

    key = jax.random.PRNGKey(0)
    key, kx = jax.random.split(key)
    x = jax.random.normal(kx, (B, dim_in), jnp.float32)

    slab, layout = init_params(key, dim_in, num_nodes, dim_out)

    out = mlpph_forward(slab, layout, x, dim_out)
    out = jax.block_until_ready(out)

    ref = ref_forward(slab, layout, x, [dim_in] + list(num_nodes), dim_out)
    assert out.shape == (B, dim_out)
    assert jnp.allclose(out, ref, atol=1e-4, rtol=1e-4)

    print("KERNEL_OK")
</pallas_src>

<mosaic_0001>
module attributes {stable_mosaic.version = 11 : i64} {
  func.func @kernel(%arg0: memref<8x16xf32, #tpu.memory_space<vmem>>, %arg1: memref<176x128xf32, #tpu.memory_space<vmem>>, %arg2: memref<8x128xf32, #tpu.memory_space<vmem>>) attributes {dimension_semantics = [], scalar_prefetch = 0 : i64, scratch_operands = 0 : i64, tpu.core_type = #tpu.core_type<tc>} {
    %c0 = arith.constant 0 : index
    %c0_0 = arith.constant 0 : index
    %0 = vector.load %arg0[%c0, %c0_0] : memref<8x16xf32, #tpu.memory_space<vmem>>, vector<8x16xf32>
    %cst = arith.constant 1.000000e+00 : f32
    %1 = vector.broadcast %cst : f32 to vector<1x8xf32>
    %c0_1 = arith.constant 0 : index
    %c0_2 = arith.constant 0 : index
    %2 = vector.load %arg1[%c0_1, %c0_2] : memref<176x128xf32, #tpu.memory_space<vmem>>, vector<16x128xf32>
    %c16 = arith.constant 16 : index
    %c0_3 = arith.constant 0 : index
    %3 = vector.load %arg1[%c16, %c0_3] : memref<176x128xf32, #tpu.memory_space<vmem>>, vector<1x128xf32>
    %cst_4 = arith.constant dense<0.000000e+00> : vector<8x128xf32>
    %4 = tpu.matmul %0, %2, %cst_4 {dimension_numbers = #tpu.dot_dimension_numbers<[1], [0], [0], [1], [0, 0, 1, 1], [], []>} : vector<8x16xf32>, vector<16x128xf32>, vector<8x128xf32> -> vector<8x128xf32>
    %5 = vector.broadcast %3 : vector<1x128xf32> to vector<8x128xf32>
    %6 = arith.addf %4, %5 : vector<8x128xf32>
    %cst_5 = arith.constant 0.000000e+00 : f32
    %7 = vector.broadcast %cst_5 : f32 to vector<8x128xf32>
    %8 = arith.maximumf %6, %7 : vector<8x128xf32>
    %cst_6 = arith.constant dense<0.000000e+00> : vector<1x128xf32>
    %9 = tpu.matmul %1, %8, %cst_6 {dimension_numbers = #tpu.dot_dimension_numbers<[1], [0], [0], [1], [0, 0, 1, 1], [], []>} : vector<1x8xf32>, vector<8x128xf32>, vector<1x128xf32> -> vector<1x128xf32>
    %cst_7 = arith.constant 1.250000e-01 : f32
    %10 = vector.broadcast %cst_7 : f32 to vector<1x128xf32>
    %11 = arith.mulf %9, %10 : vector<1x128xf32>
    %12 = arith.mulf %8, %8 : vector<8x128xf32>
    %cst_8 = arith.constant dense<0.000000e+00> : vector<1x128xf32>
    %13 = tpu.matmul %1, %12, %cst_8 {dimension_numbers = #tpu.dot_dimension_numbers<[1], [0], [0], [1], [0, 0, 1, 1], [], []>} : vector<1x8xf32>, vector<8x128xf32>, vector<1x128xf32> -> vector<1x128xf32>
    %cst_9 = arith.constant 1.250000e-01 : f32
    %14 = vector.broadcast %cst_9 : f32 to vector<1x128xf32>
    %15 = arith.mulf %13, %14 : vector<1x128xf32>
    %16 = arith.mulf %11, %11 : vector<1x128xf32>
    %17 = arith.subf %15, %16 : vector<1x128xf32>
    %cst_10 = arith.constant 0.000000e+00 : f32
    %18 = vector.broadcast %cst_10 : f32 to vector<1x128xf32>
    %19 = arith.maximumf %17, %18 : vector<1x128xf32>
    %20 = vector.broadcast %11 : vector<1x128xf32> to vector<8x128xf32>
    %21 = arith.subf %8, %20 : vector<8x128xf32>
    %cst_11 = arith.constant 9.99999974E-6 : f32
    %22 = vector.broadcast %cst_11 : f32 to vector<1x128xf32>
    %23 = arith.addf %19, %22 : vector<1x128xf32>
    %24 = math.rsqrt %23 : vector<1x128xf32>
    %25 = vector.broadcast %24 : vector<1x128xf32> to vector<8x128xf32>
    %26 = arith.mulf %21, %25 : vector<8x128xf32>
    %c24 = arith.constant 24 : index
    %c0_12 = arith.constant 0 : index
    %27 = vector.load %arg1[%c24, %c0_12] : memref<176x128xf32, #tpu.memory_space<vmem>>, vector<128x128xf32>
    %c152 = arith.constant 152 : index
    %c0_13 = arith.constant 0 : index
    %28 = vector.load %arg1[%c152, %c0_13] : memref<176x128xf32, #tpu.memory_space<vmem>>, vector<1x128xf32>
    %cst_14 = arith.constant dense<0.000000e+00> : vector<8x128xf32>
    %29 = tpu.matmul %26, %27, %cst_14 {dimension_numbers = #tpu.dot_dimension_numbers<[1], [0], [0], [1], [0, 0, 1, 1], [], []>} : vector<8x128xf32>, vector<128x128xf32>, vector<8x128xf32> -> vector<8x128xf32>
    %30 = vector.broadcast %28 : vector<1x128xf32> to vector<8x128xf32>
    %31 = arith.addf %29, %30 : vector<8x128xf32>
    %cst_15 = arith.constant 0.000000e+00 : f32
    %32 = vector.broadcast %cst_15 : f32 to vector<8x128xf32>
    %33 = arith.maximumf %31, %32 : vector<8x128xf32>
    %cst_16 = arith.constant dense<0.000000e+00> : vector<1x128xf32>
    %34 = tpu.matmul %1, %33, %cst_16 {dimension_numbers = #tpu.dot_dimension_numbers<[1], [0], [0], [1], [0, 0, 1, 1], [], []>} : vector<1x8xf32>, vector<8x128xf32>, vector<1x128xf32> -> vector<1x128xf32>
    %cst_17 = arith.constant 1.250000e-01 : f32
    %35 = vector.broadcast %cst_17 : f32 to vector<1x128xf32>
    %36 = arith.mulf %34, %35 : vector<1x128xf32>
    %37 = arith.mulf %33, %33 : vector<8x128xf32>
    %cst_18 = arith.constant dense<0.000000e+00> : vector<1x128xf32>
    %38 = tpu.matmul %1, %37, %cst_18 {dimension_numbers = #tpu.dot_dimension_numbers<[1], [0], [0], [1], [0, 0, 1, 1], [], []>} : vector<1x8xf32>, vector<8x128xf32>, vector<1x128xf32> -> vector<1x128xf32>
    %cst_19 = arith.constant 1.250000e-01 : f32
    %39 = vector.broadcast %cst_19 : f32 to vector<1x128xf32>
    %40 = arith.mulf %38, %39 : vector<1x128xf32>
    %41 = arith.mulf %36, %36 : vector<1x128xf32>
    %42 = arith.subf %40, %41 : vector<1x128xf32>
    %cst_20 = arith.constant 0.000000e+00 : f32
    %43 = vector.broadcast %cst_20 : f32 to vector<1x128xf32>
    %44 = arith.maximumf %42, %43 : vector<1x128xf32>
    %45 = vector.broadcast %36 : vector<1x128xf32> to vector<8x128xf32>
    %46 = arith.subf %33, %45 : vector<8x128xf32>
    %cst_21 = arith.constant 9.99999974E-6 : f32
    %47 = vector.broadcast %cst_21 : f32 to vector<1x128xf32>
    %48 = arith.addf %44, %47 : vector<1x128xf32>
    %49 = math.rsqrt %48 : vector<1x128xf32>
    %50 = vector.broadcast %49 : vector<1x128xf32> to vector<8x128xf32>
    %51 = arith.mulf %46, %50 : vector<8x128xf32>
    %c160 = arith.constant 160 : index
    %c0_22 = arith.constant 0 : index
    %52 = vector.load %arg1[%c160, %c0_22] : memref<176x128xf32, #tpu.memory_space<vmem>>, vector<1x128xf32>
    %c168 = arith.constant 168 : index
    %c0_23 = arith.constant 0 : index
    %53 = vector.load %arg1[%c168, %c0_23] : memref<176x128xf32, #tpu.memory_space<vmem>>, vector<1x128xf32>
    %54 = vector.broadcast %52 : vector<1x128xf32> to vector<8x128xf32>
    %55 = arith.mulf %51, %54 : vector<8x128xf32>
    %cst_24 = arith.constant dense<0.000000e+00> : vector<8xf32>
    %56 = vector.multi_reduction <add>, %55, %cst_24 [1] : vector<8x128xf32> to vector<8xf32>
    %57 = vector.shape_cast %56 : vector<8xf32> to vector<8x1xf32>
    %cst_25 = arith.constant dense<0.000000e+00> : vector<1xf32>
    %58 = vector.multi_reduction <add>, %57, %cst_25 [0] : vector<8x1xf32> to vector<1xf32>
    %59 = vector.shape_cast %58 : vector<1xf32> to vector<1x1xf32>
    %cst_26 = arith.constant 8.000000e+00 : f32
    %60 = vector.broadcast %cst_26 : f32 to vector<1x1xf32>
    %61 = arith.divf %59, %60 : vector<1x1xf32>
    %62 = arith.mulf %57, %57 : vector<8x1xf32>
    %cst_27 = arith.constant dense<0.000000e+00> : vector<1xf32>
    %63 = vector.multi_reduction <add>, %62, %cst_27 [0] : vector<8x1xf32> to vector<1xf32>
    %64 = vector.shape_cast %63 : vector<1xf32> to vector<1x1xf32>
    %cst_28 = arith.constant 8.000000e+00 : f32
    %65 = vector.broadcast %cst_28 : f32 to vector<1x1xf32>
    %66 = arith.divf %64, %65 : vector<1x1xf32>
    %67 = arith.mulf %61, %61 : vector<1x1xf32>
    %68 = arith.subf %66, %67 : vector<1x1xf32>
    %cst_29 = arith.constant 0.000000e+00 : f32
    %69 = vector.broadcast %cst_29 : f32 to vector<1x1xf32>
    %70 = arith.maximumf %68, %69 : vector<1x1xf32>
    %71 = vector.broadcast %61 : vector<1x1xf32> to vector<8x1xf32>
    %72 = arith.subf %57, %71 : vector<8x1xf32>
    %cst_30 = arith.constant 9.99999974E-6 : f32
    %73 = vector.broadcast %cst_30 : f32 to vector<1x1xf32>
    %74 = arith.addf %70, %73 : vector<1x1xf32>
    %75 = math.rsqrt %74 : vector<1x1xf32>
    %76 = vector.broadcast %75 : vector<1x1xf32> to vector<8x1xf32>
    %77 = arith.mulf %72, %76 : vector<8x1xf32>
    %78 = vector.shape_cast %77 : vector<8x1xf32> to vector<8x1xf32>
    %79 = vector.broadcast %78 : vector<8x1xf32> to vector<8x128xf32>
    %80 = vector.broadcast %53 : vector<1x128xf32> to vector<8x128xf32>
    %81 = arith.addf %79, %80 : vector<8x128xf32>
    %c0_31 = arith.constant 0 : index
    %c0_32 = arith.constant 0 : index
    %82 = vector.load %arg2[%c0_31, %c0_32] : memref<8x128xf32, #tpu.memory_space<vmem>>, vector<8x128xf32>
    tpu.vector_store %arg2[%c0_31, %c0_32], %81 {strides = array<i32>} : memref<8x128xf32, #tpu.memory_space<vmem>>, vector<8x128xf32>,
    return
  }
}

</mosaic_0001>

<llo_original>
// kernel: tpu_custom_call.1
$region0: #{tpu_custom_call.1}
  #allocation0 [shape = 'u32[]', space=smem, size = 0x4, offset = 0x4, fixed_abs, tag = 'smem constant byte address 0x4 - core index']
  #allocation1 [shape = 'u32[144,128]{1,0:T(1,128)}', space=vmem, size = 0x12000, scoped, tag = 'internal scratch']
  %s0 = inlined_call_operand.hbm [shape: f32[8,16], index: 0, kind: input, shape index: {}]
  %s1 = inlined_call_operand.hbm [shape: f32[176,128], index: 1, kind: input, shape index: {}]
  %s2 = inlined_call_operand.hbm [shape: f32[8,128], index: 2, kind: output, shape index: {}]
  %s3 = sld [smem:[#allocation0]]
  $region26: #{tpu_custom_call.1} parent=0
    _
  %s5 = ssub.s32 1, %s3
  %s6 = scalar_select 0, %s5, %s3
  $region1: #{tpu_custom_call.1} parent=0
    #allocation2 [shape = 'u8[4096]{0}', space=vmem, size = 0x1000, scoped, tag = 'input window, operand 0, single buffered']
    #allocation3 [shape = 's32[1]{0}', space=sflag, size = 0x4, scoped, tag = 'scoped memory for tpu_custom_call.1']
    #allocation4 [shape = 's32[1]{0}', space=sflag, size = 0x4, scoped, tag = 'scoped memory for tpu_custom_call.1']
    #allocation5 [shape = 'u8[90112]{0}', space=vmem, size = 0x16000, scoped, tag = 'input window, operand 1, single buffered']
    #allocation6 [shape = 's32[1]{0}', space=sflag, size = 0x4, scoped, tag = 'scoped memory for tpu_custom_call.1']
    #allocation7 [shape = 'u8[4096]{0}', space=vmem, size = 0x1000, scoped, tag = 'output window, operand 0, single buffered']
    %7 = vsyncpa [#allocation3], 0
    %8 = vsyncpa [#allocation6], 0
    %9 = vsyncpa [#allocation4], 0
    // Predicated region
    $region2: #{tpu_custom_call.1} parent=1 // pred_check
      _
    $region3: #{tpu_custom_call.1} parent=1 // pred_check_branch
      %11 = sbr.rel (0) target = $region5
    $region4: #{tpu_custom_call.1} parent=1 // pred_region
      %s13 = ssub.s32 128, 128
      %14 = vsyncadd [#allocation3], %s13
      %s16 = sshll.u32 [#allocation2], 4
      %s17 = int_to_ptr.vmem [resolvable:$true] %s16
      %19 = dma.hbm_to_vmem [thread:$0]  %s0, 128, %s17, [#allocation3]
    $region5: #{tpu_custom_call.1} parent=1 // pred_fallthru
      _
    // Predicated region
    $region6: #{tpu_custom_call.1} parent=1 // pred_check
      _
    $region7: #{tpu_custom_call.1} parent=1 // pred_check_branch
      %21 = sbr.rel (0) target = $region9
    $region8: #{tpu_custom_call.1} parent=1 // pred_region
      %s23 = ssub.s32 2816, 2816
      %24 = vsyncadd [#allocation6], %s23
      %s25 = sshll.u32 [#allocation5], 4
      %s26 = int_to_ptr.vmem [resolvable:$true] %s25
      %31 = dma.hbm_to_vmem [thread:$0]  %s1, 2816, %s26, [#allocation6], 128, 128, 8
    $region9: #{tpu_custom_call.1} parent=1 // pred_fallthru
      _
    // Predicated region
    $region10: #{tpu_custom_call.1} parent=1 // pred_check
      _
    $region11: #{tpu_custom_call.1} parent=1 // pred_check_branch
      %33 = sbr.rel (0) target = $region13
    $region12: #{tpu_custom_call.1} parent=1 // pred_region
      %34 = dma.done [#allocation3], 128
    $region13: #{tpu_custom_call.1} parent=1 // pred_fallthru
      _
    // Predicated region
    $region14: #{tpu_custom_call.1} parent=1 // pred_check
      _
    $region15: #{tpu_custom_call.1} parent=1 // pred_check_branch
      %36 = sbr.rel (0) target = $region17
    $region16: #{tpu_custom_call.1} parent=1 // pred_region
      %37 = dma.done [#allocation6], 2816
    $region17: #{tpu_custom_call.1} parent=1 // pred_fallthru
      _
    %v38 = vld [vmem:[#allocation2] sm:$0xff]
    %v39 = vld [vmem:[#allocation5] sm:$0xff]
    %v40 = vld [vmem:[#allocation5 + $0x8] sm:$0xff]
    %v41 = vld [vmem:[#allocation5 + $0x10] sm:$0x1]
    %v42 = vlaneseq
    %v43 = vshrl.u32 %v42, 7
    %v44 = vsub.s32 0, %v43
    %v45 = vrot.slane %v41, %v44
    %vm46 = vcmask 130048
    %v48 = vsel %vm46, %v38, 0
    %50 = vmatprep.subr.mxu0 0.0
    %51 = vmatpush1.msra.mxu0 %v39
    %52 = vmatprep.subr.mxu0 0.0
    %53 = vmatpush1.msra.mxu0 %v40
    %54 = vmatprep.subr.mxu0 0.0
    %55 = vmatpush1.msra.mxu0 0.0
    %56 = vmatprep.subr.mxu0 0.0
    %57 = vmatpush1.msra.mxu0 0.0
    %58 = vmatprep.subr.mxu0 0.0
    %59 = vmatpush1.msra.mxu0 0.0
    %60 = vmatprep.subr.mxu0 0.0
    %61 = vmatpush1.msra.mxu0 0.0
    %62 = vmatprep.subr.mxu0 0.0
    %63 = vmatpush1.msra.mxu0 0.0
    %64 = vmatprep.subr.mxu0 0.0
    %65 = vmatpush1.msra.mxu0 0.0
    %66 = vmatprep.subr.mxu0 0.0
    %67 = vmatpush1.msra.mxu0 0.0
    %68 = vmatprep.subr.mxu0 0.0
    %69 = vmatpush1.msra.mxu0 0.0
    %70 = vmatprep.subr.mxu0 0.0
    %71 = vmatpush1.msra.mxu0 0.0
    %72 = vmatprep.subr.mxu0 0.0
    %73 = vmatpush1.msra.mxu0 0.0
    %74 = vmatprep.subr.mxu0 0.0
    %75 = vmatpush1.msra.mxu0 0.0
    %76 = vmatprep.subr.mxu0 0.0
    %77 = vmatpush1.msra.mxu0 0.0
    %78 = vmatprep.subr.mxu0 0.0
    %79 = vmatpush1.msra.mxu0 0.0
    %80 = vmatprep.subr.mxu0 0.0
    %81 = vmatpush1.msra.mxu0 0.0
    %82 = vmatprep.subr.mxu0 0.0
    %83 = vmatpush1.msra.mxu0 0.0
    %84 = vmatprep.subr.mxu0 0.0
    %85 = vmatpush1.msra.mxu0 0.0
    %86 = vmatprep.subr.mxu0 0.0
    %87 = vmatpush1.msra.mxu0 0.0
    %88 = vmatprep.subr.mxu0 0.0
    %89 = vmatpush1.msra.mxu0 0.0
    %90 = vmatprep.subr.mxu0 0.0
    %91 = vmatpush1.msra.mxu0 0.0
    %92 = vmatprep.subr.mxu0 0.0
    %93 = vmatpush1.msra.mxu0 0.0
    %94 = vmatprep.subr.mxu0 0.0
    %95 = vmatpush1.msra.mxu0 0.0
    %96 = vmatprep.subr.mxu0 0.0
    %97 = vmatpush1.msra.mxu0 0.0
    %98 = vmatprep.subr.mxu0 0.0
    %99 = vmatpush1.msra.mxu0 0.0
    %100 = vmatprep.subr.mxu0 0.0
    %101 = vmatpush1.msra.mxu0 0.0
    %102 = vmatprep.subr.mxu0 0.0
    %103 = vmatpush1.msra.mxu0 0.0
    %104 = vmatprep.subr.mxu0 0.0
    %105 = vmatpush1.msra.mxu0 0.0
    %106 = vmatprep.subr.mxu0 0.0
    %107 = vmatpush1.msra.mxu0 0.0
    %108 = vmatprep.subr.mxu0 0.0
    %109 = vmatpush1.msra.mxu0 0.0
    %110 = vmatprep.subr.mxu0 0.0
    %111 = vmatpush1.msra.mxu0 0.0
    %112 = vmatprep.subr.mxu0 0.0
    %113 = vmatpush1.msra.mxu0 0.0
    %114 = vmatprep.mubr.f32.mxu0 0.0
    %115 = vmatmul.mubr.f32.gmra.mrb[0].mxu0 %v48
    %v116 = vpop.f32.mrb[0].mxu0
    %v117 = vadd.f32 %v45, %v116
    %v118 = vpop.f32.mrb[0].mxu0
    %119 = vdwg.mxu0
    %v120 = vmax.f32 %v117, 0.0
    %vm121 = vcmask 64512
    %v123 = vsel %vm121, 1.0, 0
    %125 = vmatprep.subr.mxu0 0.0
    %126 = vmatpush1.msra.mxu0 %v120
    %127 = vmatprep.subr.mxu0 0.0
    %128 = vmatpush1.msra.mxu0 0.0
    %129 = vmatprep.subr.mxu0 0.0
    %130 = vmatpush1.msra.mxu0 0.0
    %131 = vmatprep.subr.mxu0 0.0
    %132 = vmatpush1.msra.mxu0 0.0
    %133 = vmatprep.subr.mxu0 0.0
    %134 = vmatpush1.msra.mxu0 0.0
    %135 = vmatprep.subr.mxu0 0.0
    %136 = vmatpush1.msra.mxu0 0.0
    %137 = vmatprep.subr.mxu0 0.0
    %138 = vmatpush1.msra.mxu0 0.0
    %139 = vmatprep.subr.mxu0 0.0
    %140 = vmatpush1.msra.mxu0 0.0
    %141 = vmatprep.subr.mxu0 0.0
    %142 = vmatpush1.msra.mxu0 0.0
    %143 = vmatprep.subr.mxu0 0.0
    %144 = vmatpush1.msra.mxu0 0.0
    %145 = vmatprep.subr.mxu0 0.0
    %146 = vmatpush1.msra.mxu0 0.0
    %147 = vmatprep.subr.mxu0 0.0
    %148 = vmatpush1.msra.mxu0 0.0
    %149 = vmatprep.subr.mxu0 0.0
    %150 = vmatpush1.msra.mxu0 0.0
    %151 = vmatprep.subr.mxu0 0.0
    %152 = vmatpush1.msra.mxu0 0.0
    %153 = vmatprep.subr.mxu0 0.0
    %154 = vmatpush1.msra.mxu0 0.0
    %155 = vmatprep.subr.mxu0 0.0
    %156 = vmatpush1.msra.mxu0 0.0
    %157 = vmatprep.subr.mxu0 0.0
    %158 = vmatpush1.msra.mxu0 0.0
    %159 = vmatprep.subr.mxu0 0.0
    %160 = vmatpush1.msra.mxu0 0.0
    %161 = vmatprep.subr.mxu0 0.0
    %162 = vmatpush1.msra.mxu0 0.0
    %163 = vmatprep.subr.mxu0 0.0
    %164 = vmatpush1.msra.mxu0 0.0
    %165 = vmatprep.subr.mxu0 0.0
    %166 = vmatpush1.msra.mxu0 0.0
    %167 = vmatprep.subr.mxu0 0.0
    %168 = vmatpush1.msra.mxu0 0.0
    %169 = vmatprep.subr.mxu0 0.0
    %170 = vmatpush1.msra.mxu0 0.0
    %171 = vmatprep.subr.mxu0 0.0
    %172 = vmatpush1.msra.mxu0 0.0
    %173 = vmatprep.subr.mxu0 0.0
    %174 = vmatpush1.msra.mxu0 0.0
    %175 = vmatprep.subr.mxu0 0.0
    %176 = vmatpush1.msra.mxu0 0.0
    %177 = vmatprep.subr.mxu0 0.0
    %178 = vmatpush1.msra.mxu0 0.0
    %179 = vmatprep.subr.mxu0 0.0
    %180 = vmatpush1.msra.mxu0 0.0
    %181 = vmatprep.subr.mxu0 0.0
    %182 = vmatpush1.msra.mxu0 0.0
    %183 = vmatprep.subr.mxu0 0.0
    %184 = vmatpush1.msra.mxu0 0.0
    %185 = vmatprep.subr.mxu0 0.0
    %186 = vmatpush1.msra.mxu0 0.0
    %187 = vmatprep.subr.mxu0 0.0
    %188 = vmatpush1.msra.mxu0 0.0
    %189 = vmatprep.mubr.f32.mxu0 0.0
    %190 = vmatmul.mubr.f32.gmra.mrb[0].mxu0 %v123
    %v191 = vpop.f32.mrb[0].mxu0
    %v192 = vadd.f32 0.0, %v191
    %v193 = vpop.f32.mrb[0].mxu0
    %194 = vdwg.mxu0
    %v195 = vmul.f32 %v192, 0.125
    %v196 = vmul.f32 %v120, %v120
    %197 = vmatprep.subr.mxu0 0.0
    %198 = vmatpush1.msra.mxu0 %v196
    %199 = vmatprep.subr.mxu0 0.0
    %200 = vmatpush1.msra.mxu0 0.0
    %201 = vmatprep.subr.mxu0 0.0
    %202 = vmatpush1.msra.mxu0 0.0
    %203 = vmatprep.subr.mxu0 0.0
    %204 = vmatpush1.msra.mxu0 0.0
    %205 = vmatprep.subr.mxu0 0.0
    %206 = vmatpush1.msra.mxu0 0.0
    %207 = vmatprep.subr.mxu0 0.0
    %208 = vmatpush1.msra.mxu0 0.0
    %209 = vmatprep.subr.mxu0 0.0
    %210 = vmatpush1.msra.mxu0 0.0
    %211 = vmatprep.subr.mxu0 0.0
    %212 = vmatpush1.msra.mxu0 0.0
    %213 = vmatprep.subr.mxu0 0.0
    %214 = vmatpush1.msra.mxu0 0.0
    %215 = vmatprep.subr.mxu0 0.0
    %216 = vmatpush1.msra.mxu0 0.0
    %217 = vmatprep.subr.mxu0 0.0
    %218 = vmatpush1.msra.mxu0 0.0
    %219 = vmatprep.subr.mxu0 0.0
    %220 = vmatpush1.msra.mxu0 0.0
    %221 = vmatprep.subr.mxu0 0.0
    %222 = vmatpush1.msra.mxu0 0.0
    %223 = vmatprep.subr.mxu0 0.0
    %224 = vmatpush1.msra.mxu0 0.0
    %225 = vmatprep.subr.mxu0 0.0
    %226 = vmatpush1.msra.mxu0 0.0
    %227 = vmatprep.subr.mxu0 0.0
    %228 = vmatpush1.msra.mxu0 0.0
    %229 = vmatprep.subr.mxu0 0.0
    %230 = vmatpush1.msra.mxu0 0.0
    %231 = vmatprep.subr.mxu0 0.0
    %232 = vmatpush1.msra.mxu0 0.0
    %233 = vmatprep.subr.mxu0 0.0
    %234 = vmatpush1.msra.mxu0 0.0
    %235 = vmatprep.subr.mxu0 0.0
    %236 = vmatpush1.msra.mxu0 0.0
    %237 = vmatprep.subr.mxu0 0.0
    %238 = vmatpush1.msra.mxu0 0.0
    %239 = vmatprep.subr.mxu0 0.0
    %240 = vmatpush1.msra.mxu0 0.0
    %241 = vmatprep.subr.mxu0 0.0
    %242 = vmatpush1.msra.mxu0 0.0
    %243 = vmatprep.subr.mxu0 0.0
    %244 = vmatpush1.msra.mxu0 0.0
    %245 = vmatprep.subr.mxu0 0.0
    %246 = vmatpush1.msra.mxu0 0.0
    %247 = vmatprep.subr.mxu0 0.0
    %248 = vmatpush1.msra.mxu0 0.0
    %249 = vmatprep.subr.mxu0 0.0
    %250 = vmatpush1.msra.mxu0 0.0
    %251 = vmatprep.subr.mxu0 0.0
    %252 = vmatpush1.msra.mxu0 0.0
    %253 = vmatprep.subr.mxu0 0.0
    %254 = vmatpush1.msra.mxu0 0.0
    %255 = vmatprep.subr.mxu0 0.0
    %256 = vmatpush1.msra.mxu0 0.0
    %257 = vmatprep.subr.mxu0 0.0
    %258 = vmatpush1.msra.mxu0 0.0
    %259 = vmatprep.subr.mxu0 0.0
    %260 = vmatpush1.msra.mxu0 0.0
    %261 = vmatprep.mubr.f32.mxu0 0.0
    %262 = vmatmul.mubr.f32.gmra.mrb[0].mxu0 %v123
    %v263 = vpop.f32.mrb[0].mxu0
    %v264 = vadd.f32 0.0, %v263
    %v265 = vpop.f32.mrb[0].mxu0
    %266 = vdwg.mxu0
    %v267 = vmul.f32 %v264, 0.125
    %v268 = vmul.f32 %v195, %v195
    %v269 = vsub.f32 %v267, %v268
    %v270 = vmax.f32 %v269, 0.0
    %v271 = vlaneseq
    %v272 = vshrl.u32 %v271, 7
    %v273 = vsub.s32 0, %v272
    %v274 = vrot.slane %v195, %v273
    %v275 = vsub.f32 %v120, %v274
    %v276 = vadd.f32 %v270, 1e-05
    %v277 = vrsqrt.pop %v276
    %v278 = vlaneseq
    %v279 = vshrl.u32 %v278, 7
    %v280 = vsub.s32 0, %v279
    %v281 = vrot.slane %v277, %v280
    %v282 = vmul.f32 %v275, %v281
    %v283 = vld [vmem:[#allocation5 + $0x18] sm:$0xff]
    %v284 = vld [vmem:[#allocation5 + $0x20] sm:$0xff]
    %v285 = vld [vmem:[#allocation5 + $0x28] sm:$0xff]
    %v286 = vld [vmem:[#allocation5 + $0x30] sm:$0xff]
    %v287 = vld [vmem:[#allocation5 + $0x38] sm:$0xff]
    %v288 = vld [vmem:[#allocation5 + $0x40] sm:$0xff]
    %v289 = vld [vmem:[#allocation5 + $0x48] sm:$0xff]
    %v290 = vld [vmem:[#allocation5 + $0x50] sm:$0xff]
    %v291 = vld [vmem:[#allocation5 + $0x58] sm:$0xff]
    %v292 = vld [vmem:[#allocation5 + $0x60] sm:$0xff]
    %v293 = vld [vmem:[#allocation5 + $0x68] sm:$0xff]
    %v294 = vld [vmem:[#allocation5 + $0x70] sm:$0xff]
    %v295 = vld [vmem:[#allocation5 + $0x78] sm:$0xff]
    %v296 = vld [vmem:[#allocation5 + $0x80] sm:$0xff]
    %v297 = vld [vmem:[#allocation5 + $0x88] sm:$0xff]
    %v298 = vld [vmem:[#allocation5 + $0x90] sm:$0xff]
    %v299 = vld [vmem:[#allocation5 + $0x98] sm:$0x1]
    %v300 = vlaneseq
    %v301 = vshrl.u32 %v300, 7
    %v302 = vsub.s32 0, %v301
    %v303 = vrot.slane %v299, %v302
    %304 = vmatprep.subr.mxu0 0.0
    %305 = vmatpush1.msra.mxu0 %v283
    %306 = vmatprep.subr.mxu0 0.0
    %307 = vmatpush1.msra.mxu0 %v284
    %308 = vmatprep.subr.mxu0 0.0
    %309 = vmatpush1.msra.mxu0 %v285
    %310 = vmatprep.subr.mxu0 0.0
    %311 = vmatpush1.msra.mxu0 %v286
    %312 = vmatprep.subr.mxu0 0.0
    %313 = vmatpush1.msra.mxu0 %v287
    %314 = vmatprep.subr.mxu0 0.0
    %315 = vmatpush1.msra.mxu0 %v288
    %316 = vmatprep.subr.mxu0 0.0
    %317 = vmatpush1.msra.mxu0 %v289
    %318 = vmatprep.subr.mxu0 0.0
    %319 = vmatpush1.msra.mxu0 %v290
    %320 = vmatprep.subr.mxu0 0.0
    %321 = vmatpush1.msra.mxu0 %v291
    %322 = vmatprep.subr.mxu0 0.0
    %323 = vmatpush1.msra.mxu0 %v292
    %324 = vmatprep.subr.mxu0 0.0
    %325 = vmatpush1.msra.mxu0 %v293
    %326 = vmatprep.subr.mxu0 0.0
    %327 = vmatpush1.msra.mxu0 %v294
    %328 = vmatprep.subr.mxu0 0.0
    %329 = vmatpush1.msra.mxu0 %v295
    %330 = vmatprep.subr.mxu0 0.0
    %331 = vmatpush1.msra.mxu0 %v296
    %332 = vmatprep.subr.mxu0 0.0
    %333 = vmatpush1.msra.mxu0 %v297
    %334 = vmatprep.subr.mxu0 0.0
    %335 = vmatpush1.msra.mxu0 %v298
    %336 = vmatprep.subr.mxu0 0.0
    %337 = vmatpush1.msra.mxu0 0.0
    %338 = vmatprep.subr.mxu0 0.0
    %339 = vmatpush1.msra.mxu0 0.0
    %340 = vmatprep.subr.mxu0 0.0
    %341 = vmatpush1.msra.mxu0 0.0
    %342 = vmatprep.subr.mxu0 0.0
    %343 = vmatpush1.msra.mxu0 0.0
    %344 = vmatprep.subr.mxu0 0.0
    %345 = vmatpush1.msra.mxu0 0.0
    %346 = vmatprep.subr.mxu0 0.0
    %347 = vmatpush1.msra.mxu0 0.0
    %348 = vmatprep.subr.mxu0 0.0
    %349 = vmatpush1.msra.mxu0 0.0
    %350 = vmatprep.subr.mxu0 0.0
    %351 = vmatpush1.msra.mxu0 0.0
    %352 = vmatprep.subr.mxu0 0.0
    %353 = vmatpush1.msra.mxu0 0.0
    %354 = vmatprep.subr.mxu0 0.0
    %355 = vmatpush1.msra.mxu0 0.0
    %356 = vmatprep.subr.mxu0 0.0
    %357 = vmatpush1.msra.mxu0 0.0
    %358 = vmatprep.subr.mxu0 0.0
    %359 = vmatpush1.msra.mxu0 0.0
    %360 = vmatprep.subr.mxu0 0.0
    %361 = vmatpush1.msra.mxu0 0.0
    %362 = vmatprep.subr.mxu0 0.0
    %363 = vmatpush1.msra.mxu0 0.0
    %364 = vmatprep.subr.mxu0 0.0
    %365 = vmatpush1.msra.mxu0 0.0
    %366 = vmatprep.subr.mxu0 0.0
    %367 = vmatpush1.msra.mxu0 0.0
    %368 = vmatprep.mubr.f32.mxu0 0.0
    %369 = vmatmul.mubr.f32.gmra.mrb[0].mxu0 %v282
    %v370 = vpop.f32.mrb[0].mxu0
    %v371 = vadd.f32 %v303, %v370
    %v372 = vpop.f32.mrb[0].mxu0
    %373 = vdwg.mxu0
    %v374 = vmax.f32 %v371, 0.0
    %375 = vmatprep.subr.mxu0 0.0
    %376 = vmatpush1.msra.mxu0 %v374
    %377 = vmatprep.subr.mxu0 0.0
    %378 = vmatpush1.msra.mxu0 0.0
    %379 = vmatprep.subr.mxu0 0.0
    %380 = vmatpush1.msra.mxu0 0.0
    %381 = vmatprep.subr.mxu0 0.0
    %382 = vmatpush1.msra.mxu0 0.0
    %383 = vmatprep.subr.mxu0 0.0
    %384 = vmatpush1.msra.mxu0 0.0
    %385 = vmatprep.subr.mxu0 0.0
    %386 = vmatpush1.msra.mxu0 0.0
    %387 = vmatprep.subr.mxu0 0.0
    %388 = vmatpush1.msra.mxu0 0.0
    %389 = vmatprep.subr.mxu0 0.0
    %390 = vmatpush1.msra.mxu0 0.0
    %391 = vmatprep.subr.mxu0 0.0
    %392 = vmatpush1.msra.mxu0 0.0
    %393 = vmatprep.subr.mxu0 0.0
    %394 = vmatpush1.msra.mxu0 0.0
    %395 = vmatprep.subr.mxu0 0.0
    %396 = vmatpush1.msra.mxu0 0.0
    %397 = vmatprep.subr.mxu0 0.0
    %398 = vmatpush1.msra.mxu0 0.0
    %399 = vmatprep.subr.mxu0 0.0
    %400 = vmatpush1.msra.mxu0 0.0
    %401 = vmatprep.subr.mxu0 0.0
    %402 = vmatpush1.msra.mxu0 0.0
    %403 = vmatprep.subr.mxu0 0.0
    %404 = vmatpush1.msra.mxu0 0.0
    %405 = vmatprep.subr.mxu0 0.0
    %406 = vmatpush1.msra.mxu0 0.0
    %407 = vmatprep.subr.mxu0 0.0
    %408 = vmatpush1.msra.mxu0 0.0
    %409 = vmatprep.subr.mxu0 0.0
    %410 = vmatpush1.msra.mxu0 0.0
    %411 = vmatprep.subr.mxu0 0.0
    %412 = vmatpush1.msra.mxu0 0.0
    %413 = vmatprep.subr.mxu0 0.0
    %414 = vmatpush1.msra.mxu0 0.0
    %415 = vmatprep.subr.mxu0 0.0
    %416 = vmatpush1.msra.mxu0 0.0
    %417 = vmatprep.subr.mxu0 0.0
    %418 = vmatpush1.msra.mxu0 0.0
    %419 = vmatprep.subr.mxu0 0.0
    %420 = vmatpush1.msra.mxu0 0.0
    %421 = vmatprep.subr.mxu0 0.0
    %422 = vmatpush1.msra.mxu0 0.0
    %423 = vmatprep.subr.mxu0 0.0
    %424 = vmatpush1.msra.mxu0 0.0
    %425 = vmatprep.subr.mxu0 0.0
    %426 = vmatpush1.msra.mxu0 0.0
    %427 = vmatprep.subr.mxu0 0.0
    %428 = vmatpush1.msra.mxu0 0.0
    %429 = vmatprep.subr.mxu0 0.0
    %430 = vmatpush1.msra.mxu0 0.0
    %431 = vmatprep.subr.mxu0 0.0
    %432 = vmatpush1.msra.mxu0 0.0
    %433 = vmatprep.subr.mxu0 0.0
    %434 = vmatpush1.msra.mxu0 0.0
    %435 = vmatprep.subr.mxu0 0.0
    %436 = vmatpush1.msra.mxu0 0.0
    %437 = vmatprep.subr.mxu0 0.0
    %438 = vmatpush1.msra.mxu0 0.0
    %439 = vmatprep.mubr.f32.mxu0 0.0
    %440 = vmatmul.mubr.f32.gmra.mrb[0].mxu0 %v123
    %v441 = vpop.f32.mrb[0].mxu0
    %v442 = vadd.f32 0.0, %v441
    %v443 = vpop.f32.mrb[0].mxu0
    %444 = vdwg.mxu0
    %v445 = vmul.f32 %v442, 0.125
    %v446 = vmul.f32 %v374, %v374
    %447 = vmatprep.subr.mxu0 0.0
    %448 = vmatpush1.msra.mxu0 %v446
    %449 = vmatprep.subr.mxu0 0.0
    %450 = vmatpush1.msra.mxu0 0.0
    %451 = vmatprep.subr.mxu0 0.0
    %452 = vmatpush1.msra.mxu0 0.0
    %453 = vmatprep.subr.mxu0 0.0
    %454 = vmatpush1.msra.mxu0 0.0
    %455 = vmatprep.subr.mxu0 0.0
    %456 = vmatpush1.msra.mxu0 0.0
    %457 = vmatprep.subr.mxu0 0.0
    %458 = vmatpush1.msra.mxu0 0.0
    %459 = vmatprep.subr.mxu0 0.0
    %460 = vmatpush1.msra.mxu0 0.0
    %461 = vmatprep.subr.mxu0 0.0
    %462 = vmatpush1.msra.mxu0 0.0
    %463 = vmatprep.subr.mxu0 0.0
    %464 = vmatpush1.msra.mxu0 0.0
    %465 = vmatprep.subr.mxu0 0.0
    %466 = vmatpush1.msra.mxu0 0.0
    %467 = vmatprep.subr.mxu0 0.0
    %468 = vmatpush1.msra.mxu0 0.0
    %469 = vmatprep.subr.mxu0 0.0
    %470 = vmatpush1.msra.mxu0 0.0
    %471 = vmatprep.subr.mxu0 0.0
    %472 = vmatpush1.msra.mxu0 0.0
    %473 = vmatprep.subr.mxu0 0.0
    %474 = vmatpush1.msra.mxu0 0.0
    %475 = vmatprep.subr.mxu0 0.0
    %476 = vmatpush1.msra.mxu0 0.0
    %477 = vmatprep.subr.mxu0 0.0
    %478 = vmatpush1.msra.mxu0 0.0
    %479 = vmatprep.subr.mxu0 0.0
    %480 = vmatpush1.msra.mxu0 0.0
    %481 = vmatprep.subr.mxu0 0.0
    %482 = vmatpush1.msra.mxu0 0.0
    %483 = vmatprep.subr.mxu0 0.0
    %484 = vmatpush1.msra.mxu0 0.0
    %485 = vmatprep.subr.mxu0 0.0
    %486 = vmatpush1.msra.mxu0 0.0
    %487 = vmatprep.subr.mxu0 0.0
    %488 = vmatpush1.msra.mxu0 0.0
    %489 = vmatprep.subr.mxu0 0.0
    %490 = vmatpush1.msra.mxu0 0.0
    %491 = vmatprep.subr.mxu0 0.0
    %492 = vmatpush1.msra.mxu0 0.0
    %493 = vmatprep.subr.mxu0 0.0
    %494 = vmatpush1.msra.mxu0 0.0
    %495 = vmatprep.subr.mxu0 0.0
    %496 = vmatpush1.msra.mxu0 0.0
    %497 = vmatprep.subr.mxu0 0.0
    %498 = vmatpush1.msra.mxu0 0.0
    %499 = vmatprep.subr.mxu0 0.0
    %500 = vmatpush1.msra.mxu0 0.0
    %501 = vmatprep.subr.mxu0 0.0
    %502 = vmatpush1.msra.mxu0 0.0
    %503 = vmatprep.subr.mxu0 0.0
    %504 = vmatpush1.msra.mxu0 0.0
    %505 = vmatprep.subr.mxu0 0.0
    %506 = vmatpush1.msra.mxu0 0.0
    %507 = vmatprep.subr.mxu0 0.0
    %508 = vmatpush1.msra.mxu0 0.0
    %509 = vmatprep.subr.mxu0 0.0
    %510 = vmatpush1.msra.mxu0 0.0
    %511 = vmatprep.mubr.f32.mxu0 0.0
    %512 = vmatmul.mubr.f32.gmra.mrb[0].mxu0 %v123
    %v513 = vpop.f32.mrb[0].mxu0
    %v514 = vadd.f32 0.0, %v513
    %v515 = vpop.f32.mrb[0].mxu0
    %516 = vdwg.mxu0
    %v517 = vmul.f32 %v514, 0.125
    %v518 = vmul.f32 %v445, %v445
    %v519 = vsub.f32 %v517, %v518
    %v520 = vmax.f32 %v519, 0.0
    %v521 = vlaneseq
    %v522 = vshrl.u32 %v521, 7
    %v523 = vsub.s32 0, %v522
    %v524 = vrot.slane %v445, %v523
    %v525 = vsub.f32 %v374, %v524
    %v526 = vadd.f32 %v520, 1e-05
    %v527 = vrsqrt.pop %v526
    %v528 = vlaneseq
    %v529 = vshrl.u32 %v528, 7
    %v530 = vsub.s32 0, %v529
    %v531 = vrot.slane %v527, %v530
    %v532 = vmul.f32 %v525, %v531
    %v533 = vld [vmem:[#allocation5 + $0xa0] sm:$0x1]
    %v534 = vld [vmem:[#allocation5 + $0xa8] sm:$0x1]
    %v535 = vlaneseq
    %v536 = vshrl.u32 %v535, 7
    %v537 = vsub.s32 0, %v536
    %v538 = vrot.slane %v533, %v537
    %v539 = vmul.f32 %v532, %v538
    %540 = vadd.xlane.f32.xlu0 %v539
    %v541 = vpop.xlane.xlu0 %540
    %v542 = vrot.slane %v541, 4
    %v543 = vadd.f32 %v541, %v542
    %v544 = vrot.slane %v543, 2
    %v545 = vadd.f32 %v543, %v544
    %v546 = vrot.slane %v545, 1
    %v547 = vadd.f32 %v545, %v546
    %v548 = vrcp.pop 8.0
    %v549 = vmul.f32 %v547, %v548
    %v550 = vmul.f32 %v541, %v541
    %v551 = vrot.slane %v550, 4
    %v552 = vadd.f32 %v550, %v551
    %v553 = vrot.slane %v552, 2
    %v554 = vadd.f32 %v552, %v553
    %v555 = vrot.slane %v554, 1
    %v556 = vadd.f32 %v554, %v555
    %v557 = vmul.f32 %v556, %v548
    %v558 = vmul.f32 %v549, %v549
    %v559 = vsub.f32 %v557, %v558
    %v560 = vmax.f32 %v559, 0.0
    %v561 = vsub.f32 %v541, %v549
    %v562 = vadd.f32 %v560, 1e-05
    %v563 = vrsqrt.pop %v562
    %v564 = vmul.f32 %v561, %v563
    %v565 = vlaneseq
    %v566 = vshrl.u32 %v565, 7
    %v567 = vsub.s32 0, %v566
    %v568 = vrot.slane %v534, %v567
    %v569 = vadd.f32 %v564, %v568
    %570 = vst [vmem:[#allocation7] sm:$0xff] %v569
    // Predicated region
    $region18: #{tpu_custom_call.1} parent=1 // pred_check
      _
    $region19: #{tpu_custom_call.1} parent=1 // pred_check_branch
      %572 = sbr.rel (0) target = $region21
    $region20: #{tpu_custom_call.1} parent=1 // pred_region
      %s574 = ssub.s32 128, 128
      %575 = vsyncadd [#allocation4], %s574
      %s577 = sshll.u32 [#allocation7], 4
      %s578 = int_to_ptr.vmem [resolvable:$true] %s577
      %580 = dma.vmem_to_hbm [thread:$0]  %s578, 128, %s2, [#allocation4]
    $region21: #{tpu_custom_call.1} parent=1 // pred_fallthru
      _
    // Predicated region
    $region22: #{tpu_custom_call.1} parent=1 // pred_check
      _
    $region23: #{tpu_custom_call.1} parent=1 // pred_check_branch
      %582 = sbr.rel (0) target = $region25
    $region24: #{tpu_custom_call.1} parent=1 // pred_region
      %583 = dma.done [#allocation4], 128
    $region25: #{tpu_custom_call.1} parent=1 // pred_fallthru
      _
    %584 = vsyncpa [#allocation3], 1
    %585 = vsyncpa [#allocation6], 1
    %586 = vsyncpa [#allocation4], 1

</llo_original>
